<compile_context>
chip_gen: v7x
topology: tpu7x:2x2x1
jax: 0.10.0
libtpu: 0.0.40
codegen_flags: <defaults>
</compile_context>

<pallas_src>
import functools
import math

import jax
import jax.numpy as jnp
from jax.experimental import pallas as pl
from jax.experimental.pallas import tpu as pltpu


# ---------------------------------------------------------------------------
# helpers
# ---------------------------------------------------------------------------
_SINGLE_BUFFER_OK = None


def _single_buffer_ok() -> bool:
    """Probe (once) whether this jax supports pipeline_mode=pl.Buffered(1)."""
    global _SINGLE_BUFFER_OK
    if _SINGLE_BUFFER_OK is not None:
        return _SINGLE_BUFFER_OK
    ok = False
    if hasattr(pl, "Buffered"):
        try:
            def _probe(x_ref, o_ref):
                o_ref[...] = x_ref[...] + 1.0

            out = pl.pallas_call(
                _probe,
                out_shape=jax.ShapeDtypeStruct((8, 128), jnp.float32),
                grid=(1,),
                in_specs=[pl.BlockSpec((8, 128), lambda i: (0, 0),
                                       pipeline_mode=pl.Buffered(1))],
                out_specs=pl.BlockSpec((8, 128), lambda i: (0, 0)),
            )(jnp.zeros((8, 128), jnp.float32))
            jax.block_until_ready(out)
            ok = True
        except Exception:
            ok = False
    _SINGLE_BUFFER_OK = ok
    return ok


def _spec(block_shape, index_map, *, single_buffer: bool = False):
    """BlockSpec; operands whose block index never changes across the grid can be
    single-buffered (halves their VMEM footprint) when the jax version allows."""
    if single_buffer and _single_buffer_ok():
        return pl.BlockSpec(block_shape, index_map, pipeline_mode=pl.Buffered(1))
    return pl.BlockSpec(block_shape, index_map)


def _divisor_tile(m: int, target: int) -> int:
    """Largest row tile <= target that divides m and is a multiple of 8; falls
    back to a single block. Avoids jnp.pad / output-slice HBM round trips."""
    if m <= target:
        return m
    for t in range(target, 7, -1):
        if m % t == 0 and t % 8 == 0:
            return t
    return m


def _vmem_budget() -> int:
    """Scoped-VMEM budget derived from the chip (v5e/v6e 128 MiB, v7x 64 MiB)."""
    cap = None
    try:
        cap = getattr(pltpu.get_tpu_info(), "vmem_capacity_bytes", None)
    except Exception:
        cap = None
    if not cap:
        cap = 64 * 1024 * 1024
    return min(int(cap * 3 // 4), 100 * 1024 * 1024)


# ---------------------------------------------------------------------------
# Fused LayerNorm1 + Q/K/V projections (one HBM pass over x, bf16 MXU inputs)
#   LN(x) = alpha * (x - mean) / (std + eps) + bias      (torch.std: unbiased N-1)
# ---------------------------------------------------------------------------
def _ln_qkv_kernel(x_ref, wq_ref, wk_ref, wv_ref, bq_ref, bk_ref, bv_ref, ln_ref,
                   q_ref, k_ref, v_ref, *, eps: float, d: int):
    x = x_ref[...].astype(jnp.float32)
    mean = jnp.mean(x, axis=-1, keepdims=True)
    var = jnp.sum((x - mean) ** 2, axis=-1, keepdims=True) / (d - 1)
    inv = pl.reciprocal(jnp.sqrt(var) + eps, approx=True)     # EUP slot
    xn = (ln_ref[0] * (x - mean) * inv + ln_ref[1]).astype(jnp.bfloat16)

    q_ref[...] = (jnp.dot(xn, wq_ref[...], preferred_element_type=jnp.float32)
                  + bq_ref[...]).astype(q_ref.dtype)
    k_ref[...] = (jnp.dot(xn, wk_ref[...], preferred_element_type=jnp.float32)
                  + bk_ref[...]).astype(k_ref.dtype)
    v_ref[...] = (jnp.dot(xn, wv_ref[...], preferred_element_type=jnp.float32)
                  + bv_ref[...]).astype(v_ref.dtype)


# ---------------------------------------------------------------------------
# Flash-style attention.  Grid = (batch, head_group, kv_tile); online softmax in
# f32 scratch; q/k/v/out all stay in the 2-D (B*S, d_model) head-major layout.
# ---------------------------------------------------------------------------
def _flash_attn_kernel(q_ref, k_ref, v_ref, mask_ref, o_ref,
                       m_sc, l_sc, acc_sc, *, scale: float, hs: int, d_k: int):
    j = pl.program_id(2)
    nkv = pl.num_programs(2)

    @pl.when(j == 0)
    def _init():
        m_sc[...] = jnp.full_like(m_sc, -jnp.inf)
        l_sc[...] = jnp.zeros_like(l_sc)
        acc_sc[...] = jnp.zeros_like(acc_sc)

    neg = mask_ref[0] == 0                                   # (sq, tk) bool (int8 mask)

    for hh in range(hs):                                     # static, small unroll
        lo, hi = hh * d_k, (hh + 1) * d_k
        qh = q_ref[:, lo:hi]                                 # (sq, d_k) bf16
        kh = k_ref[:, lo:hi]                                 # (tk, d_k) bf16
        vh = v_ref[:, lo:hi]                                 # (tk, d_k) bf16

        # contract last dims (no k.T materialization), f32 accumulate
        s = jax.lax.dot_general(qh, kh, (((1,), (1,)), ((), ())),
                                preferred_element_type=jnp.float32) * scale
        s = jnp.where(neg, jnp.float32(-1e9), s)             # masked_fill(mask==0,-1e9)

        m_prev = m_sc[hh]                                    # (sq, 1)
        m_new = jnp.maximum(m_prev, jnp.max(s, axis=-1, keepdims=True))
        alpha = jnp.exp(m_prev - m_new)
        p = jnp.exp(s - m_new)                               # unnormalized, f32
        # TODO(synk): attention-score dropout (training mode) not implemented.
        l_sc[hh] = alpha * l_sc[hh] + jnp.sum(p, axis=-1, keepdims=True)
        pv = jnp.dot(p.astype(vh.dtype), vh, preferred_element_type=jnp.float32)
        acc_sc[hh] = alpha * acc_sc[hh] + pv
        m_sc[hh] = m_new

    @pl.when(j == nkv - 1)
    def _finalize():
        for hh in range(hs):
            inv_l = pl.reciprocal(l_sc[hh], approx=True)     # (sq, 1), EUP slot
            o_ref[:, hh * d_k:(hh + 1) * d_k] = (acc_sc[hh] * inv_l).astype(o_ref.dtype)


# ---------------------------------------------------------------------------
# Output projection with the first residual add fused in (bf16 MXU inputs)
# ---------------------------------------------------------------------------
def _linear_res_kernel(x_ref, w_ref, b_ref, res_ref, o_ref):
    y = jnp.dot(x_ref[...], w_ref[...], preferred_element_type=jnp.float32)
    o_ref[...] = (y + b_ref[...] + res_ref[...].astype(jnp.float32)).astype(o_ref.dtype)


def linear_residual(x2d, w, b, residual, *, vmem_limit, tm_target=512):
    m, d_in = x2d.shape
    d_out = w.shape[1]
    tm = _divisor_tile(m, tm_target)
    return pl.pallas_call(
        _linear_res_kernel,
        out_shape=jax.ShapeDtypeStruct((m, d_out), residual.dtype),
        grid=(m // tm,),
        in_specs=[
            pl.BlockSpec((tm, d_in), lambda i: (i, 0)),
            _spec((d_in, d_out), lambda i: (0, 0), single_buffer=True),
            _spec((1, d_out), lambda i: (0, 0), single_buffer=True),
            pl.BlockSpec((tm, d_out), lambda i: (i, 0)),
        ],
        out_specs=pl.BlockSpec((tm, d_out), lambda i: (i, 0)),
        compiler_params=pltpu.CompilerParams(
            dimension_semantics=("parallel",), vmem_limit_bytes=vmem_limit),
    )(x2d.astype(jnp.bfloat16), w.astype(jnp.bfloat16),
      b.reshape(1, d_out).astype(jnp.float32), residual)


# ---------------------------------------------------------------------------
# MultiHeadAttention block (LN1+QKV fused, flash attention, Wo+residual fused)
# ---------------------------------------------------------------------------
def multi_head_attention(x2d, params, mask_i8, batch, seq, num_heads, *,
                         vmem_limit, tm_target=512):
    m, d_model = x2d.shape
    d_k = d_model // num_heads

    # ---- fused LayerNorm1 + Q/K/V projections ----
    tm = _divisor_tile(m, tm_target)
    ln1 = jnp.concatenate([params["ln1_alpha"].reshape(1),
                           params["ln1_bias"].reshape(1)]).astype(jnp.float32)
    wq, wk, wv = (params[n].astype(jnp.bfloat16) for n in ("wq", "wk", "wv"))
    bq, bk, bv = (params[n].reshape(1, d_model).astype(jnp.float32)
                  for n in ("bq", "bk", "bv"))

    q, k, v = pl.pallas_call(
        functools.partial(_ln_qkv_kernel, eps=1e-6, d=d_model),
        out_shape=tuple(jax.ShapeDtypeStruct((m, d_model), jnp.bfloat16)
                        for _ in range(3)),
        grid=(m // tm,),
        in_specs=[
            pl.BlockSpec((tm, d_model), lambda i: (i, 0)),
            _spec((d_model, d_model), lambda i: (0, 0), single_buffer=True),
            _spec((d_model, d_model), lambda i: (0, 0), single_buffer=True),
            _spec((d_model, d_model), lambda i: (0, 0), single_buffer=True),
            _spec((1, d_model), lambda i: (0, 0), single_buffer=True),
            _spec((1, d_model), lambda i: (0, 0), single_buffer=True),
            _spec((1, d_model), lambda i: (0, 0), single_buffer=True),
            pl.BlockSpec(memory_space=pltpu.MemorySpace.SMEM),
        ],
        out_specs=tuple(pl.BlockSpec((tm, d_model), lambda i: (i, 0))
                        for _ in range(3)),
        compiler_params=pltpu.CompilerParams(
            dimension_semantics=("parallel",), vmem_limit_bytes=vmem_limit),
    )(x2d, wq, wk, wv, bq, bk, bv, ln1)

    # ---- head grouping: smallest group that gives a lane-dense (>=128) block ----
    hs = num_heads
    for cand in range(1, num_heads):
        if num_heads % cand == 0 and (cand * d_k) % 128 == 0:
            hs = cand
            break
    num_hg = num_heads // hs

    # ---- KV tile (flash): bound VMEM to O(seq * tk) ----
    if seq <= 512:
        tk = seq
    else:
        tk = seq
        for c in (512, 384, 256, 128):
            if seq % c == 0:
                tk = c
                break
    num_kv = seq // tk

    def _q_map(b, h, j):
        return (b, h)

    def _kv_map(b, h, j):
        return (b * num_kv + j, h)

    def _mask_map(b, h, j):
        return (b, 0, j)

    attn = pl.pallas_call(
        functools.partial(_flash_attn_kernel, scale=1.0 / math.sqrt(d_k),
                          hs=hs, d_k=d_k),
        out_shape=jax.ShapeDtypeStruct((m, d_model), jnp.bfloat16),
        grid=(batch, num_hg, num_kv),
        in_specs=[
            pl.BlockSpec((seq, hs * d_k), _q_map),
            pl.BlockSpec((tk, hs * d_k), _kv_map),
            pl.BlockSpec((tk, hs * d_k), _kv_map),
            pl.BlockSpec((1, seq, tk), _mask_map),       # int8 mask, shared by heads
        ],
        out_specs=pl.BlockSpec((seq, hs * d_k), _q_map),
        scratch_shapes=[
            pltpu.VMEM((hs, seq, 1), jnp.float32),       # running max
            pltpu.VMEM((hs, seq, 1), jnp.float32),       # running sum
            pltpu.VMEM((hs, seq, d_k), jnp.float32),     # output accumulator
        ],
        compiler_params=pltpu.CompilerParams(
            dimension_semantics=("parallel", "parallel", "arbitrary"),
            vmem_limit_bytes=vmem_limit),
    )(q, k, v, mask_i8)

    # TODO(synk): residual-path dropout (training mode) omitted; eval forward.
    return linear_residual(attn, params["wo"], params["bo"], x2d,
                           vmem_limit=vmem_limit)


# ---------------------------------------------------------------------------
# Fused LayerNorm2 + FeedForward (+ second residual): d_ff-tiled reduction with
# f32 accumulator; LN computed once per row tile into a bf16 scratch.
# ---------------------------------------------------------------------------
def _ffn_kernel(x_ref, w1_ref, b1_ref, w2_ref, b2_ref, ln_ref, seed_ref,
                o_ref, acc_ref, xn_ref, *, eps: float, d: int,
                dropout_p: float, training: bool):
    f = pl.program_id(1)
    nf = pl.num_programs(1)

    @pl.when(f == 0)
    def _init():
        x = x_ref[...].astype(jnp.float32)
        mean = jnp.mean(x, axis=-1, keepdims=True)
        var = jnp.sum((x - mean) ** 2, axis=-1, keepdims=True) / (d - 1)
        inv = pl.reciprocal(jnp.sqrt(var) + eps, approx=True)
        xn_ref[...] = (ln_ref[0] * (x - mean) * inv + ln_ref[1]).astype(xn_ref.dtype)
        acc_ref[...] = jnp.zeros_like(acc_ref)

    # linear_1 tile: (tm, d_model)bf16 @ (d_model, tf)bf16 -> f32, bias + ReLU
    h = jnp.dot(xn_ref[...], w1_ref[...], preferred_element_type=jnp.float32)
    h = jnp.maximum(h + b1_ref[...], 0.0)

    if training and dropout_p >= 1.0:
        h = jnp.zeros_like(h)
    elif training and dropout_p > 0.0:
        # TODO(synk): pltpu.prng_* needs a real TPU; not traced in the eval demo.
        i = pl.program_id(0)
        pltpu.prng_seed(seed_ref[0] + i * nf + f)
        bits = pltpu.bitcast(pltpu.prng_random_bits(h.shape), jnp.uint32)
        threshold = jnp.uint32(min(int(dropout_p * 4294967296.0), 4294967295))
        h = jnp.where(bits >= threshold, h, 0.0)             # mask only; scale later

    acc_ref[...] += jnp.dot(h.astype(w2_ref.dtype), w2_ref[...],
                            preferred_element_type=jnp.float32)

    @pl.when(f == nf - 1)
    def _finalize():
        out = acc_ref[...]
        if training and 0.0 < dropout_p < 1.0:
            out = out * jnp.float32(1.0 / (1.0 - dropout_p))
        out = out + b2_ref[...] + x_ref[...].astype(jnp.float32)   # fused residual
        o_ref[...] = out.astype(o_ref.dtype)


def _choose_tf(d_model: int, d_ff: int, tm: int, budget: int) -> int:
    """d_ff tile: prefer fully-resident weights (tf == d_ff, single reduction
    step); otherwise stream 128-multiple tiles that fit the VMEM budget."""
    budget = int(budget * 0.85)

    def footprint(t: int, wbuf: int) -> int:
        weights = wbuf * (d_model * t + t * d_model) * 2            # W1 + W2 bf16
        biases = wbuf * t * 4 + 2 * d_model * 4
        x_io = 2 * tm * d_model * 4 * 2                              # x + out (dbl, f32)
        scratch = tm * d_model * 4 + tm * d_model * 2                # acc f32 + xn bf16
        h_mid = tm * t * 4
        return weights + biases + x_io + scratch + h_mid

    if footprint(d_ff, 1) <= budget:
        return d_ff
    divisors = [c for c in range(128, d_ff, 128) if d_ff % c == 0]
    for c in sorted(divisors, reverse=True):
        if footprint(c, 2) <= budget:
            return c
    return divisors[0] if divisors else d_ff


def feed_forward(x2d, w1, b1, w2, b2, ln_alpha, ln_bias, *, dropout_p=0.0,
                 training=False, seed=0, vmem_limit, tm_target=512, tf=None):
    m, d_model = x2d.shape
    d_ff = w1.shape[1]
    tm = _divisor_tile(m, tm_target)
    if tf is None:
        tf = _choose_tf(d_model, d_ff, tm, vmem_limit)
    assert d_ff % tf == 0
    num_m, num_f = m // tm, d_ff // tf
    resident = num_f == 1          # whole W1/W2 resident -> constant index maps

    ln = jnp.concatenate([ln_alpha.reshape(1), ln_bias.reshape(1)]).astype(jnp.float32)
    seed_arr = jnp.array([seed], dtype=jnp.int32)

    return pl.pallas_call(
        functools.partial(_ffn_kernel, eps=1e-6, d=d_model,
                          dropout_p=dropout_p, training=training),
        out_shape=jax.ShapeDtypeStruct((m, d_model), x2d.dtype),
        grid=(num_m, num_f),
        in_specs=[
            pl.BlockSpec((tm, d_model), lambda i, f: (i, 0)),                     # x / res
            _spec((d_model, tf), lambda i, f: (0, f), single_buffer=resident),     # W1
            _spec((1, tf), lambda i, f: (0, f), single_buffer=resident),           # b1
            _spec((tf, d_model), lambda i, f: (f, 0), single_buffer=resident),     # W2
            _spec((1, d_model), lambda i, f: (0, 0), single_buffer=True),          # b2
            pl.BlockSpec(memory_space=pltpu.MemorySpace.SMEM),                     # LN a/b
            pl.BlockSpec(memory_space=pltpu.MemorySpace.SMEM),                     # seed
        ],
        out_specs=pl.BlockSpec((tm, d_model), lambda i, f: (i, 0)),
        scratch_shapes=[pltpu.VMEM((tm, d_model), jnp.float32),    # f32 accumulator
                        pltpu.VMEM((tm, d_model), jnp.bfloat16)],  # LN(x) staging
        compiler_params=pltpu.CompilerParams(
            dimension_semantics=("parallel", "arbitrary"),
            vmem_limit_bytes=vmem_limit),
    )(x2d, w1.astype(jnp.bfloat16), b1.reshape(1, d_ff).astype(jnp.float32),
      w2.astype(jnp.bfloat16), b2.reshape(1, d_model).astype(jnp.float32),
      ln, seed_arr)


# ---------------------------------------------------------------------------
# EncoderBlock forward (eval mode: all dropouts are identity)
# ---------------------------------------------------------------------------
def encoder_block(x, mask, params, *, dropout_p: float = 0.1,
                  training: bool = False, seed: int = 0):
    batch, seq, d_model = x.shape
    num_heads = params["num_heads"]
    x2d = x.reshape(batch * seq, d_model)
    vmem_limit = _vmem_budget()

    # int8 mask (4x less DMA than f32), broadcast over heads as in torch
    mask_i8 = (jnp.broadcast_to(mask, (batch, 1, seq, seq)).reshape(batch, seq, seq)
               != 0).astype(jnp.int8)

    # residual connection 0: x + MHA(LN1(x), ..., mask)
    x1 = multi_head_attention(x2d, params, mask_i8, batch, seq, num_heads,
                              vmem_limit=vmem_limit)

    # residual connection 1: x1 + FFN(LN2(x1))  (LN2 fused into the FFN kernel)
    x2 = feed_forward(x1, params["w1"], params["b1"], params["w2"], params["b2"],
                      params["ln2_alpha"], params["ln2_bias"],
                      dropout_p=dropout_p, training=training, seed=seed,
                      vmem_limit=vmem_limit)
    return x2.reshape(batch, seq, d_model)


# ---------------------------------------------------------------------------
# parameter init (nn.Linear: U(-1/sqrt(fan_in), 1/sqrt(fan_in)); weights stored
# as (in, out) so kernels compute x @ W)
# ---------------------------------------------------------------------------
def init_params(key, d_model, d_ff, num_heads, dtype=jnp.float32):
    ks = jax.random.split(key, 12)

    def lin(kw, kb, fan_in, fan_out):
        bound = 1.0 / math.sqrt(fan_in)
        w = jax.random.uniform(kw, (fan_in, fan_out), dtype, -bound, bound)
        b = jax.random.uniform(kb, (fan_out,), dtype, -bound, bound)
        return w, b

    wq, bq = lin(ks[0], ks[1], d_model, d_model)
    wk, bk = lin(ks[2], ks[3], d_model, d_model)
    wv, bv = lin(ks[4], ks[5], d_model, d_model)
    wo, bo = lin(ks[6], ks[7], d_model, d_model)
    w1, b1 = lin(ks[8], ks[9], d_model, d_ff)
    w2, b2 = lin(ks[10], ks[11], d_ff, d_model)
    return dict(num_heads=num_heads,
                wq=wq, bq=bq, wk=wk, bk=bk, wv=wv, bv=bv, wo=wo, bo=bo,
                w1=w1, b1=b1, w2=w2, b2=b2,
                ln1_alpha=jnp.ones((1,), dtype), ln1_bias=jnp.zeros((1,), dtype),
                ln2_alpha=jnp.ones((1,), dtype), ln2_bias=jnp.zeros((1,), dtype))


# ---------------------------------------------------------------------------
# pure-JAX reference (eval mode), mirroring the kernels' bf16/f32 precision policy
# ---------------------------------------------------------------------------
def _ref_encoder_block(x, mask, params, eps=1e-6):
    batch, seq, d_model = x.shape
    nh = params["num_heads"]
    d_k = d_model // nh
    bf = lambda t: t.astype(jnp.bfloat16)

    def ln(t, alpha, bias):
        mean = t.mean(axis=-1, keepdims=True)
        var = ((t - mean) ** 2).sum(axis=-1, keepdims=True) / (t.shape[-1] - 1)
        return alpha * (t - mean) / (jnp.sqrt(var) + eps) + bias

    x2d = x.reshape(-1, d_model)
    n1 = bf(ln(x2d, params["ln1_alpha"], params["ln1_bias"]))
    q = jnp.dot(n1, bf(params["wq"]), preferred_element_type=jnp.float32) + params["bq"]
    k = jnp.dot(n1, bf(params["wk"]), preferred_element_type=jnp.float32) + params["bk"]
    v = jnp.dot(n1, bf(params["wv"]), preferred_element_type=jnp.float32) + params["bv"]

    def heads(t):
        return bf(t).reshape(batch, seq, nh, d_k).transpose(0, 2, 1, 3)

    qh, kh, vh = heads(q), heads(k), heads(v)
    s = jnp.einsum("bhqd,bhkd->bhqk", qh, kh,
                   preferred_element_type=jnp.float32) / math.sqrt(d_k)
    s = jnp.where(mask == 0, -1e9, s)
    p = jax.nn.softmax(s, axis=-1)
    o = jnp.einsum("bhqk,bhkd->bhqd", bf(p), vh, preferred_element_type=jnp.float32)
    o2 = bf(o.transpose(0, 2, 1, 3).reshape(-1, d_model))
    x1 = x2d + jnp.dot(o2, bf(params["wo"]),
                       preferred_element_type=jnp.float32) + params["bo"]

    n2 = bf(ln(x1, params["ln2_alpha"], params["ln2_bias"]))
    h = jnp.maximum(jnp.dot(n2, bf(params["w1"]),
                            preferred_element_type=jnp.float32) + params["b1"], 0.0)
    f = jnp.dot(bf(h), bf(params["w2"]),
                preferred_element_type=jnp.float32) + params["b2"]
    return (x1 + f).reshape(batch, seq, d_model)


if __name__ == "__main__":
    batch, seq, d_model, num_heads, d_ff = 2, 8, 32, 4, 128
    dropout = 0.1   # module hyperparameter; eval-mode forward makes it identity

    key = jax.random.PRNGKey(0)
    kx, kp = jax.random.split(key)
    x = jax.random.normal(kx, (batch, seq, d_model), dtype=jnp.float32)
    params = init_params(kp, d_model, d_ff, num_heads)

    # causal mask in the (batch, 1, seq, seq) torch convention (broadcast over heads)
    mask = jnp.tril(jnp.ones((seq, seq), jnp.float32))[None, None, :, :]
    mask = jnp.broadcast_to(mask, (batch, 1, seq, seq))

    out = encoder_block(x, mask, params, dropout_p=dropout, training=False)
    out = jax.block_until_ready(out)
    assert out.shape == (batch, seq, d_model)

    ref = _ref_encoder_block(x, mask, params)
    max_err = float(jnp.max(jnp.abs(out - ref)))
    assert jnp.allclose(out, ref, atol=2e-2, rtol=2e-2), f"max_err={max_err}"

    print("KERNEL_OK")
</pallas_src>

<mosaic_0001>
module attributes {stable_mosaic.version = 11 : i64} {
  func.func @_probe(%arg0: i32, %arg1: memref<8x128xf32, #tpu.memory_space<vmem>>, %arg2: memref<8x128xf32, #tpu.memory_space<vmem>>) attributes {dimension_semantics = [#tpu.dimension_semantics<arbitrary>], iteration_bounds = array<i64: 1>, scalar_prefetch = 0 : i64, scratch_operands = 0 : i64, tpu.core_type = #tpu.core_type<tc>, window_params = [{pipeline_mode = #tpu.pipeline_mode<synchronous>, transform_indices = @transform_0, window_bounds = array<i64: 8, 128>}, {pipeline_mode = #tpu.pipeline_mode<synchronous>, transform_indices = @transform_1, window_bounds = array<i64: 8, 128>}]} {
    %c0 = arith.constant 0 : index
    %c0_0 = arith.constant 0 : index
    %0 = vector.load %arg1[%c0, %c0_0] : memref<8x128xf32, #tpu.memory_space<vmem>>, vector<8x128xf32>
    %cst = arith.constant 1.000000e+00 : f32
    %1 = vector.broadcast %cst : f32 to vector<8x128xf32>
    %2 = arith.addf %0, %1 : vector<8x128xf32>
    %c0_1 = arith.constant 0 : index
    %c0_2 = arith.constant 0 : index
    %3 = vector.load %arg2[%c0_1, %c0_2] : memref<8x128xf32, #tpu.memory_space<vmem>>, vector<8x128xf32>
    tpu.vector_store %arg2[%c0_1, %c0_2], %2 {strides = array<i32>} : memref<8x128xf32, #tpu.memory_space<vmem>>, vector<8x128xf32>,
    return
  }
  func.func @transform_0(%arg0: i32) -> (i32, i32) {
    %c0_i32 = arith.constant 0 : i32
    %c0_i32_0 = arith.constant 0 : i32
    %c0_i32_1 = arith.constant 0 : i32
    return %c0_i32, %c0_i32_0 : i32, i32
  }
  func.func @transform_1(%arg0: i32) -> (i32, i32) {
    %c0_i32 = arith.constant 0 : i32
    %c0_i32_0 = arith.constant 0 : i32
    %c0_i32_1 = arith.constant 0 : i32
    return %c0_i32, %c0_i32_0 : i32, i32
  }
}

module attributes {stable_mosaic.version = 11 : i64} {
  func.func @_ln_qkv_kernel(%arg0: i32, %arg1: memref<16x32xf32, #tpu.memory_space<vmem>>, %arg2: memref<32x32xbf16, #tpu.memory_space<vmem>>, %arg3: memref<32x32xbf16, #tpu.memory_space<vmem>>, %arg4: memref<32x32xbf16, #tpu.memory_space<vmem>>, %arg5: memref<1x32xf32, #tpu.memory_space<vmem>>, %arg6: memref<1x32xf32, #tpu.memory_space<vmem>>, %arg7: memref<1x32xf32, #tpu.memory_space<vmem>>, %arg8: memref<2xf32, #tpu.memory_space<smem>>, %arg9: memref<16x32xbf16, #tpu.memory_space<vmem>>, %arg10: memref<16x32xbf16, #tpu.memory_space<vmem>>, %arg11: memref<16x32xbf16, #tpu.memory_space<vmem>>) attributes {dimension_semantics = [#tpu.dimension_semantics<parallel>], iteration_bounds = array<i64: 1>, scalar_prefetch = 0 : i64, scratch_operands = 0 : i64, tpu.core_type = #tpu.core_type<tc>, window_params = [{transform_indices = @transform_0, window_bounds = array<i64: 16, 32>}, {pipeline_mode = #tpu.pipeline_mode<synchronous>, transform_indices = @transform_1, window_bounds = array<i64: 32, 32>}, {pipeline_mode = #tpu.pipeline_mode<synchronous>, transform_indices = @transform_2, window_bounds = array<i64: 32, 32>}, {pipeline_mode = #tpu.pipeline_mode<synchronous>, transform_indices = @transform_3, window_bounds = array<i64: 32, 32>}, {pipeline_mode = #tpu.pipeline_mode<synchronous>, transform_indices = @transform_4, window_bounds = array<i64: 1, 32>}, {pipeline_mode = #tpu.pipeline_mode<synchronous>, transform_indices = @transform_5, window_bounds = array<i64: 1, 32>}, {pipeline_mode = #tpu.pipeline_mode<synchronous>, transform_indices = @transform_6, window_bounds = array<i64: 1, 32>}, {transform_indices = @transform_7, window_bounds = array<i64: 2>}, {transform_indices = @transform_8, window_bounds = array<i64: 16, 32>}, {transform_indices = @transform_9, window_bounds = array<i64: 16, 32>}, {transform_indices = @transform_10, window_bounds = array<i64: 16, 32>}]} {
    %c0 = arith.constant 0 : index
    %c0_0 = arith.constant 0 : index
    %0 = vector.load %arg1[%c0, %c0_0] : memref<16x32xf32, #tpu.memory_space<vmem>>, vector<16x32xf32>
    %cst = arith.constant dense<0.000000e+00> : vector<16xf32>
    %1 = vector.multi_reduction <add>, %0, %cst [1] : vector<16x32xf32> to vector<16xf32>
    %2 = vector.shape_cast %1 : vector<16xf32> to vector<16x1xf32>
    %cst_1 = arith.constant 3.200000e+01 : f32
    %3 = vector.broadcast %cst_1 : f32 to vector<16x1xf32>
    %4 = arith.divf %2, %3 : vector<16x1xf32>
    %5 = vector.broadcast %4 : vector<16x1xf32> to vector<16x32xf32>
    %6 = arith.subf %0, %5 : vector<16x32xf32>
    %7 = arith.mulf %6, %6 : vector<16x32xf32>
    %cst_2 = arith.constant dense<0.000000e+00> : vector<16xf32>
    %8 = vector.multi_reduction <add>, %7, %cst_2 [1] : vector<16x32xf32> to vector<16xf32>
    %9 = vector.shape_cast %8 : vector<16xf32> to vector<16x1xf32>
    %cst_3 = arith.constant 3.100000e+01 : f32
    %10 = vector.broadcast %cst_3 : f32 to vector<16x1xf32>
    %11 = arith.divf %9, %10 : vector<16x1xf32>
    %12 = math.sqrt %11 : vector<16x1xf32>
    %cst_4 = arith.constant 9.99999997E-7 : f32
    %13 = vector.broadcast %cst_4 : f32 to vector<16x1xf32>
    %14 = arith.addf %12, %13 : vector<16x1xf32>
    %15 = tpu.reciprocal %14 {approx = true} : vector<16x1xf32> -> vector<16x1xf32>
    %c0_5 = arith.constant 0 : index
    %16 = memref.load %arg8[%c0_5] : memref<2xf32, #tpu.memory_space<smem>>
    %17 = vector.broadcast %4 : vector<16x1xf32> to vector<16x32xf32>
    %18 = arith.subf %0, %17 : vector<16x32xf32>
    %19 = vector.broadcast %16 : f32 to vector<16x32xf32>
    %20 = arith.mulf %19, %18 : vector<16x32xf32>
    %21 = vector.broadcast %15 : vector<16x1xf32> to vector<16x32xf32>
    %22 = arith.mulf %20, %21 : vector<16x32xf32>
    %c1 = arith.constant 1 : index
    %23 = memref.load %arg8[%c1] : memref<2xf32, #tpu.memory_space<smem>>
    %24 = vector.broadcast %23 : f32 to vector<16x32xf32>
    %25 = arith.addf %22, %24 : vector<16x32xf32>
    %26 = arith.truncf %25 : vector<16x32xf32> to vector<16x32xbf16>
    %c0_6 = arith.constant 0 : index
    %c0_7 = arith.constant 0 : index
    %27 = vector.load %arg2[%c0_6, %c0_7] : memref<32x32xbf16, #tpu.memory_space<vmem>>, vector<32x32xbf16>
    %cst_8 = arith.constant dense<0.000000e+00> : vector<16x32xf32>
    %28 = tpu.matmul %26, %27, %cst_8 {dimension_numbers = #tpu.dot_dimension_numbers<[1], [0], [0], [1], [0, 0, 1, 1], [], []>} : vector<16x32xbf16>, vector<32x32xbf16>, vector<16x32xf32> -> vector<16x32xf32>
    %c0_9 = arith.constant 0 : index
    %c0_10 = arith.constant 0 : index
    %29 = vector.load %arg5[%c0_9, %c0_10] : memref<1x32xf32, #tpu.memory_space<vmem>>, vector<1x32xf32>
    %30 = vector.broadcast %29 : vector<1x32xf32> to vector<16x32xf32>
    %31 = arith.addf %28, %30 : vector<16x32xf32>
    %32 = arith.truncf %31 : vector<16x32xf32> to vector<16x32xbf16>
    %c0_11 = arith.constant 0 : index
    %c0_12 = arith.constant 0 : index
    %33 = vector.load %arg9[%c0_11, %c0_12] : memref<16x32xbf16, #tpu.memory_space<vmem>>, vector<16x32xbf16>
    tpu.vector_store %arg9[%c0_11, %c0_12], %32 {strides = array<i32>} : memref<16x32xbf16, #tpu.memory_space<vmem>>, vector<16x32xbf16>,
    %c0_13 = arith.constant 0 : index
    %c0_14 = arith.constant 0 : index
    %34 = vector.load %arg3[%c0_13, %c0_14] : memref<32x32xbf16, #tpu.memory_space<vmem>>, vector<32x32xbf16>
    %cst_15 = arith.constant dense<0.000000e+00> : vector<16x32xf32>
    %35 = tpu.matmul %26, %34, %cst_15 {dimension_numbers = #tpu.dot_dimension_numbers<[1], [0], [0], [1], [0, 0, 1, 1], [], []>} : vector<16x32xbf16>, vector<32x32xbf16>, vector<16x32xf32> -> vector<16x32xf32>
    %c0_16 = arith.constant 0 : index
    %c0_17 = arith.constant 0 : index
    %36 = vector.load %arg6[%c0_16, %c0_17] : memref<1x32xf32, #tpu.memory_space<vmem>>, vector<1x32xf32>
    %37 = vector.broadcast %36 : vector<1x32xf32> to vector<16x32xf32>
    %38 = arith.addf %35, %37 : vector<16x32xf32>
    %39 = arith.truncf %38 : vector<16x32xf32> to vector<16x32xbf16>
    %c0_18 = arith.constant 0 : index
    %c0_19 = arith.constant 0 : index
    %40 = vector.load %arg10[%c0_18, %c0_19] : memref<16x32xbf16, #tpu.memory_space<vmem>>, vector<16x32xbf16>
    tpu.vector_store %arg10[%c0_18, %c0_19], %39 {strides = array<i32>} : memref<16x32xbf16, #tpu.memory_space<vmem>>, vector<16x32xbf16>,
    %c0_20 = arith.constant 0 : index
    %c0_21 = arith.constant 0 : index
    %41 = vector.load %arg4[%c0_20, %c0_21] : memref<32x32xbf16, #tpu.memory_space<vmem>>, vector<32x32xbf16>
    %cst_22 = arith.constant dense<0.000000e+00> : vector<16x32xf32>
    %42 = tpu.matmul %26, %41, %cst_22 {dimension_numbers = #tpu.dot_dimension_numbers<[1], [0], [0], [1], [0, 0, 1, 1], [], []>} : vector<16x32xbf16>, vector<32x32xbf16>, vector<16x32xf32> -> vector<16x32xf32>
    %c0_23 = arith.constant 0 : index
    %c0_24 = arith.constant 0 : index
    %43 = vector.load %arg7[%c0_23, %c0_24] : memref<1x32xf32, #tpu.memory_space<vmem>>, vector<1x32xf32>
    %44 = vector.broadcast %43 : vector<1x32xf32> to vector<16x32xf32>
    %45 = arith.addf %42, %44 : vector<16x32xf32>
    %46 = arith.truncf %45 : vector<16x32xf32> to vector<16x32xbf16>
    %c0_25 = arith.constant 0 : index
    %c0_26 = arith.constant 0 : index
    %47 = vector.load %arg11[%c0_25, %c0_26] : memref<16x32xbf16, #tpu.memory_space<vmem>>, vector<16x32xbf16>
    tpu.vector_store %arg11[%c0_25, %c0_26], %46 {strides = array<i32>} : memref<16x32xbf16, #tpu.memory_space<vmem>>, vector<16x32xbf16>,
    return
  }
  func.func @transform_0(%arg0: i32) -> (i32, i32) {
    %c0_i32 = arith.constant 0 : i32
    %c0_i32_0 = arith.constant 0 : i32
    return %arg0, %c0_i32 : i32, i32
  }
  func.func @transform_1(%arg0: i32) -> (i32, i32) {
    %c0_i32 = arith.constant 0 : i32
    %c0_i32_0 = arith.constant 0 : i32
    %c0_i32_1 = arith.constant 0 : i32
    return %c0_i32, %c0_i32_0 : i32, i32
  }
  func.func @transform_2(%arg0: i32) -> (i32, i32) {
    %c0_i32 = arith.constant 0 : i32
    %c0_i32_0 = arith.constant 0 : i32
    %c0_i32_1 = arith.constant 0 : i32
    return %c0_i32, %c0_i32_0 : i32, i32
  }
  func.func @transform_3(%arg0: i32) -> (i32, i32) {
    %c0_i32 = arith.constant 0 : i32
    %c0_i32_0 = arith.constant 0 : i32
    %c0_i32_1 = arith.constant 0 : i32
    return %c0_i32, %c0_i32_0 : i32, i32
  }
  func.func @transform_4(%arg0: i32) -> (i32, i32) {
    %c0_i32 = arith.constant 0 : i32
    %c0_i32_0 = arith.constant 0 : i32
    %c0_i32_1 = arith.constant 0 : i32
    return %c0_i32, %c0_i32_0 : i32, i32
  }
  func.func @transform_5(%arg0: i32) -> (i32, i32) {
    %c0_i32 = arith.constant 0 : i32
    %c0_i32_0 = arith.constant 0 : i32
    %c0_i32_1 = arith.constant 0 : i32
    return %c0_i32, %c0_i32_0 : i32, i32
  }
  func.func @transform_6(%arg0: i32) -> (i32, i32) {
    %c0_i32 = arith.constant 0 : i32
    %c0_i32_0 = arith.constant 0 : i32
    %c0_i32_1 = arith.constant 0 : i32
    return %c0_i32, %c0_i32_0 : i32, i32
  }
  func.func @transform_7(%arg0: i32) -> i32 {
    %c0_i32 = arith.constant 0 : i32
    %c0_i32_0 = arith.constant 0 : i32
    return %c0_i32 : i32
  }
  func.func @transform_8(%arg0: i32) -> (i32, i32) {
    %c0_i32 = arith.constant 0 : i32
    %c0_i32_0 = arith.constant 0 : i32
    return %arg0, %c0_i32 : i32, i32
  }
  func.func @transform_9(%arg0: i32) -> (i32, i32) {
    %c0_i32 = arith.constant 0 : i32
    %c0_i32_0 = arith.constant 0 : i32
    return %arg0, %c0_i32 : i32, i32
  }
  func.func @transform_10(%arg0: i32) -> (i32, i32) {
    %c0_i32 = arith.constant 0 : i32
    %c0_i32_0 = arith.constant 0 : i32
    return %arg0, %c0_i32 : i32, i32
  }
}

</mosaic_0001>

<llo_original>
// kernel: tpu_custom_call.1
$region0: #{tpu_custom_call.1}
  #allocation0 [shape = 'u32[]', space=smem, size = 0x4, offset = 0x4, fixed_abs, tag = 'smem constant byte address 0x4 - core index']
  #allocation1 [shape = 'u32[144,128]{1,0:T(1,128)}', space=vmem, size = 0x12000, scoped, tag = 'internal scratch']
  %s0 = inlined_call_operand.hbm [shape: f32[8,128], index: 0, kind: input, shape index: {}]
  %s1 = inlined_call_operand.hbm [shape: f32[8,128], index: 1, kind: output, shape index: {}]
  %s2 = sld [smem:[#allocation0]]
  $region18: #{tpu_custom_call.1} parent=0
    _
  %s4 = ssub.s32 1, %s2
  %s5 = scalar_select 0, %s4, %s2
  $region1: #{tpu_custom_call.1} parent=0
    #allocation2 [shape = 'u8[4096]{0}', space=vmem, size = 0x1000, scoped, tag = 'input window, operand 0, single buffered']
    #allocation3 [shape = 's32[1]{0}', space=sflag, size = 0x4, scoped, tag = 'scoped memory for tpu_custom_call.1']
    #allocation4 [shape = 's32[1]{0}', space=sflag, size = 0x4, scoped, tag = 'scoped memory for tpu_custom_call.1']
    #allocation5 [shape = 'u8[4096]{0}', space=vmem, size = 0x1000, scoped, tag = 'output window, operand 0, single buffered']
    %6 = vsyncpa [#allocation3], 0
    %7 = vsyncpa [#allocation4], 0
    // Predicated region
    $region2: #{tpu_custom_call.1} parent=1 // pred_check
      _
    $region3: #{tpu_custom_call.1} parent=1 // pred_check_branch
      %9 = sbr.rel (0) target = $region5
    $region4: #{tpu_custom_call.1} parent=1 // pred_region
      %s11 = ssub.s32 128, 128
      %12 = vsyncadd [#allocation3], %s11
      %s14 = sshll.u32 [#allocation2], 4
      %s15 = int_to_ptr.vmem [resolvable:$true] %s14
      %17 = dma.hbm_to_vmem [thread:$0]  %s0, 128, %s15, [#allocation3]
    $region5: #{tpu_custom_call.1} parent=1 // pred_fallthru
      _
    // Predicated region
    $region6: #{tpu_custom_call.1} parent=1 // pred_check
      _
    $region7: #{tpu_custom_call.1} parent=1 // pred_check_branch
      %19 = sbr.rel (0) target = $region9
    $region8: #{tpu_custom_call.1} parent=1 // pred_region
      %20 = dma.done [#allocation3], 128
    $region9: #{tpu_custom_call.1} parent=1 // pred_fallthru
      _
    %v21 = vld [vmem:[#allocation2] sm:$0xff]
    %v22 = vadd.f32 %v21, 1.0
    %23 = vst [vmem:[#allocation5] sm:$0xff] %v22
    // Predicated region
    $region10: #{tpu_custom_call.1} parent=1 // pred_check
      _
    $region11: #{tpu_custom_call.1} parent=1 // pred_check_branch
      %25 = sbr.rel (0) target = $region13
    $region12: #{tpu_custom_call.1} parent=1 // pred_region
      %s27 = ssub.s32 128, 128
      %28 = vsyncadd [#allocation4], %s27
      %s30 = sshll.u32 [#allocation5], 4
      %s31 = int_to_ptr.vmem [resolvable:$true] %s30
      %33 = dma.vmem_to_hbm [thread:$0]  %s31, 128, %s1, [#allocation4]
    $region13: #{tpu_custom_call.1} parent=1 // pred_fallthru
      _
    // Predicated region
    $region14: #{tpu_custom_call.1} parent=1 // pred_check
      _
    $region15: #{tpu_custom_call.1} parent=1 // pred_check_branch
      %35 = sbr.rel (0) target = $region17
    $region16: #{tpu_custom_call.1} parent=1 // pred_region
      %36 = dma.done [#allocation4], 128
    $region17: #{tpu_custom_call.1} parent=1 // pred_fallthru
      _
    %37 = vsyncpa [#allocation3], 1
    %38 = vsyncpa [#allocation4], 1

// kernel: tpu_custom_call.1
$region0: #{tpu_custom_call.1}
  #allocation0 [shape = 'u32[]', space=smem, size = 0x4, offset = 0x4, fixed_abs, tag = 'smem constant byte address 0x4 - core index']
  #allocation1 [shape = 'u32[144,128]{1,0:T(1,128)}', space=vmem, size = 0x12000, scoped, tag = 'internal scratch']
  %s0 = inlined_call_operand.hbm [shape: f32[16,32], index: 0, kind: input, shape index: {}]
  %s1 = inlined_call_operand.hbm [shape: bf16[32,32], index: 1, kind: input, shape index: {}]
  %s2 = inlined_call_operand.hbm [shape: bf16[32,32], index: 2, kind: input, shape index: {}]
  %s3 = inlined_call_operand.hbm [shape: bf16[32,32], index: 3, kind: input, shape index: {}]
  %s4 = inlined_call_operand.vmem [shape: f32[1,32], index: 4, kind: input, shape index: {}]
  %s5 = inlined_call_operand.vmem [shape: f32[1,32], index: 5, kind: input, shape index: {}]
  %s6 = inlined_call_operand.vmem [shape: f32[1,32], index: 6, kind: input, shape index: {}]
  %s7 = inlined_call_operand.vmem [shape: f32[2], index: 7, kind: input, shape index: {}]
  %s8 = inlined_call_operand.hbm [shape: bf16[16,32], index: 8, kind: output, shape index: {0}]
  %s9 = inlined_call_operand.hbm [shape: bf16[16,32], index: 9, kind: output, shape index: {1}]
  %s10 = inlined_call_operand.hbm [shape: bf16[16,32], index: 10, kind: output, shape index: {2}]
  %11 = xla_tuple %s8, %s9, %s10
  %s12 = sld [smem:[#allocation0]]
  $region78: #{tpu_custom_call.1} parent=0
    _
  %s14 = ssub.s32 1, %s12
  %s15 = scalar_select 0, %s14, %s12
  $region1: #{tpu_custom_call.1} parent=0
    #allocation2 [shape = 'u8[8192]{0}', space=vmem, size = 0x2000, scoped, tag = 'input window, operand 0, single buffered']
    #allocation3 [shape = 's32[1]{0}', space=sflag, size = 0x4, scoped, tag = 'scoped memory for tpu_custom_call.1']
    #allocation4 [shape = 's32[1]{0}', space=sflag, size = 0x4, scoped, tag = 'scoped memory for tpu_custom_call.1']
    #allocation5 [shape = 's32[1]{0}', space=sflag, size = 0x4, scoped, tag = 'scoped memory for tpu_custom_call.1']
    #allocation6 [shape = 'u8[8192]{0}', space=vmem, size = 0x2000, scoped, tag = 'input window, operand 1, single buffered']
    #allocation7 [shape = 's32[1]{0}', space=sflag, size = 0x4, scoped, tag = 'scoped memory for tpu_custom_call.1']
    #allocation8 [shape = 'u8[8192]{0}', space=vmem, size = 0x2000, scoped, tag = 'input window, operand 2, single buffered']
    #allocation9 [shape = 'u8[8192]{0}', space=vmem, size = 0x2000, scoped, tag = 'input window, operand 3, single buffered']
    #allocation10 [shape = 's32[1]{0}', space=sflag, size = 0x4, scoped, tag = 'scoped memory for tpu_custom_call.1']
    #allocation11 [shape = 'u8[512]{0}', space=smem, size = 0x200, scoped, tag = 'input window, operand 7, single buffered']
    #allocation12 [shape = 'u8[4096]{0}', space=vmem, size = 0x1000, scoped, tag = 'output window, operand 0, single buffered']
    #allocation13 [shape = 'u8[4096]{0}', space=vmem, size = 0x1000, scoped, tag = 'output window, operand 1, single buffered']
    #allocation14 [shape = 's32[1]{0}', space=sflag, size = 0x4, scoped, tag = 'scoped memory for tpu_custom_call.1']
    #allocation15 [shape = 'u8[4096]{0}', space=vmem, size = 0x1000, scoped, tag = 'output window, operand 2, single buffered']
    %16 = vsyncpa [#allocation3], 0
    %17 = vsyncpa [#allocation7], 0
    %18 = vsyncpa [#allocation10], 0
    %19 = vsyncpa [#allocation5], 0
    %20 = vsyncpa [#allocation4], 0
    %21 = vsyncpa [#allocation14], 0
    // Predicated region
    $region2: #{tpu_custom_call.1} parent=1 // pred_check
      _
    $region3: #{tpu_custom_call.1} parent=1 // pred_check_branch
      %23 = sbr.rel (0) target = $region5
    $region4: #{tpu_custom_call.1} parent=1 // pred_region
      %s25 = ssub.s32 256, 256
      %26 = vsyncadd [#allocation3], %s25
      %s27 = sshll.u32 [#allocation2], 4
      %s28 = int_to_ptr.vmem [resolvable:$true] %s27
      %33 = dma.hbm_to_vmem [thread:$0]  %s0, 256, %s28, [#allocation3], 128, 128, 8
    $region5: #{tpu_custom_call.1} parent=1 // pred_fallthru
      _
    // Predicated region
    $region6: #{tpu_custom_call.1} parent=1 // pred_check
      _
    $region7: #{tpu_custom_call.1} parent=1 // pred_check_branch
      %35 = sbr.rel (0) target = $region9
    $region8: #{tpu_custom_call.1} parent=1 // pred_region
      %s37 = ssub.s32 256, 256
      %38 = vsyncadd [#allocation7], %s37
      %s39 = sshll.u32 [#allocation6], 4
      %s40 = int_to_ptr.vmem [resolvable:$true] %s39
      %45 = dma.hbm_to_vmem [thread:$0]  %s1, 256, %s40, [#allocation7], 64, 64, 4
    $region9: #{tpu_custom_call.1} parent=1 // pred_fallthru
      _
    // Predicated region
    $region10: #{tpu_custom_call.1} parent=1 // pred_check
      _
    $region11: #{tpu_custom_call.1} parent=1 // pred_check_branch
      %47 = sbr.rel (0) target = $region13
    $region12: #{tpu_custom_call.1} parent=1 // pred_region
      %s49 = ssub.s32 256, 256
      %50 = vsyncadd [#allocation7], %s49
      %s51 = sshll.u32 [#allocation8], 4
      %s52 = int_to_ptr.vmem [resolvable:$true] %s51
      %57 = dma.hbm_to_vmem [thread:$0]  %s2, 256, %s52, [#allocation7], 64, 64, 4
    $region13: #{tpu_custom_call.1} parent=1 // pred_fallthru
      _
    // Predicated region
    $region14: #{tpu_custom_call.1} parent=1 // pred_check
      _
    $region15: #{tpu_custom_call.1} parent=1 // pred_check_branch
      %59 = sbr.rel (0) target = $region17
    $region16: #{tpu_custom_call.1} parent=1 // pred_region
      %s61 = ssub.s32 256, 256
      %62 = vsyncadd [#allocation10], %s61
      %s63 = sshll.u32 [#allocation9], 4
      %s64 = int_to_ptr.vmem [resolvable:$true] %s63
      %69 = dma.hbm_to_vmem [thread:$0]  %s3, 256, %s64, [#allocation10], 64, 64, 4
    $region17: #{tpu_custom_call.1} parent=1 // pred_fallthru
      _
    // Predicated region
    $region18: #{tpu_custom_call.1} parent=1 // pred_check
      _
    $region19: #{tpu_custom_call.1} parent=1 // pred_check_branch
      %71 = sbr.rel (0) target = $region21
    $region20: #{tpu_custom_call.1} parent=1 // pred_region
      _
    $region21: #{tpu_custom_call.1} parent=1 // pred_fallthru
      _
    // Predicated region
    $region22: #{tpu_custom_call.1} parent=1 // pred_check
      _
    $region23: #{tpu_custom_call.1} parent=1 // pred_check_branch
      %73 = sbr.rel (0) target = $region25
    $region24: #{tpu_custom_call.1} parent=1 // pred_region
      _
    $region25: #{tpu_custom_call.1} parent=1 // pred_fallthru
      _
    // Predicated region
    $region26: #{tpu_custom_call.1} parent=1 // pred_check
      _
    $region27: #{tpu_custom_call.1} parent=1 // pred_check_branch
      %75 = sbr.rel (0) target = $region29
    $region28: #{tpu_custom_call.1} parent=1 // pred_region
      _
    $region29: #{tpu_custom_call.1} parent=1 // pred_fallthru
      _
    // Predicated region
    $region30: #{tpu_custom_call.1} parent=1 // pred_check
      _
    $region31: #{tpu_custom_call.1} parent=1 // pred_check_branch
      %77 = sbr.rel (0) target = $region33
    $region32: #{tpu_custom_call.1} parent=1 // pred_region
      %s79 = ssub.s32 16, 16
      %80 = vsyncadd [#allocation5], %s79
      %s82 = sshll.u32 %s7, 4
      %s83 = int_to_ptr.vmem [resolvable:$true] %s82
      %85 = dma.vmem_to_smem %s83, 16, [#allocation11], [#allocation5]
    $region33: #{tpu_custom_call.1} parent=1 // pred_fallthru
      _
    // Predicated region
    $region34: #{tpu_custom_call.1} parent=1 // pred_check
      _
    $region35: #{tpu_custom_call.1} parent=1 // pred_check_branch
      %87 = sbr.rel (0) target = $region37
    $region36: #{tpu_custom_call.1} parent=1 // pred_region
      %88 = dma.done [#allocation3], 256
    $region37: #{tpu_custom_call.1} parent=1 // pred_fallthru
      _
    // Predicated region
    $region38: #{tpu_custom_call.1} parent=1 // pred_check
      _
    $region39: #{tpu_custom_call.1} parent=1 // pred_check_branch
      %90 = sbr.rel (0) target = $region41
    $region40: #{tpu_custom_call.1} parent=1 // pred_region
      %91 = dma.done [#allocation7], 256
    $region41: #{tpu_custom_call.1} parent=1 // pred_fallthru
      _
    // Predicated region
    $region42: #{tpu_custom_call.1} parent=1 // pred_check
      _
    $region43: #{tpu_custom_call.1} parent=1 // pred_check_branch
      %93 = sbr.rel (0) target = $region45
    $region44: #{tpu_custom_call.1} parent=1 // pred_region
      %94 = dma.done [#allocation7], 256
    $region45: #{tpu_custom_call.1} parent=1 // pred_fallthru
      _
    // Predicated region
    $region46: #{tpu_custom_call.1} parent=1 // pred_check
      _
    $region47: #{tpu_custom_call.1} parent=1 // pred_check_branch
      %96 = sbr.rel (0) target = $region49
    $region48: #{tpu_custom_call.1} parent=1 // pred_region
      %97 = dma.done [#allocation10], 256
    $region49: #{tpu_custom_call.1} parent=1 // pred_fallthru
      _
    // Predicated region
    $region50: #{tpu_custom_call.1} parent=1 // pred_check
      _
    $region51: #{tpu_custom_call.1} parent=1 // pred_check_branch
      %99 = sbr.rel (0) target = $region53
    $region52: #{tpu_custom_call.1} parent=1 // pred_region
      %100 = dma.done [#allocation5], 16
    $region53: #{tpu_custom_call.1} parent=1 // pred_fallthru
      _
    %101 = sfence
    %v103 = vld [vmem:[#allocation2] sm:$0xff]
    %v104 = vld [vmem:[#allocation2 + $0x8] sm:$0xff]
    %vm105 = vcmask 261120
    %v106 = vsel %vm105, %v103, 0.0
    %107 = vadd.xlane.f32.xlu0 %v106
    %v108 = vpop.xlane.xlu0 %107
    %v109 = vsel %vm105, %v104, 0.0
    %110 = vadd.xlane.f32.xlu0 %v109
    %v111 = vpop.xlane.xlu0 %110
    %v112 = vrcp.pop 32.0
    %v113 = vmul.f32 %v108, %v112
    %v114 = vmul.f32 %v111, %v112
    %v115 = vsub.f32 %v103, %v113
    %v116 = vsub.f32 %v104, %v114
    %v117 = vmul.f32 %v115, %v115
    %v118 = vmul.f32 %v116, %v116
    %v119 = vsel %vm105, %v117, 0.0
    %120 = vadd.xlane.f32.xlu0 %v119
    %v121 = vpop.xlane.xlu0 %120
    %v122 = vsel %vm105, %v118, 0.0
    %123 = vadd.xlane.f32.xlu0 %v122
    %v124 = vpop.xlane.xlu0 %123
    %v125 = vrcp.pop 31.0
    %v126 = vmul.f32 %v121, %v125
    %v127 = vmul.f32 %v124, %v125
    %v128 = vrsqrt.pop %v126
    %v129 = vmul.f32 %v126, %v128
    %vm130 = vcmp.eq.f32.partialorder %v126, inf
    %v131 = vsel %vm130, %v126, %v129
    %vm132 = vcmp.eq.f32.partialorder %v126, 0.0
    %v133 = vand.u32 %v126, 2147483648
    %v134 = vsel %vm132, %v133, %v131
    %v135 = vrsqrt.pop %v127
    %v136 = vmul.f32 %v127, %v135
    %vm137 = vcmp.eq.f32.partialorder %v127, inf
    %v138 = vsel %vm137, %v127, %v136
    %vm139 = vcmp.eq.f32.partialorder %v127, 0.0
    %v140 = vand.u32 %v127, 2147483648
    %v141 = vsel %vm139, %v140, %v138
    %v142 = vadd.f32 %v134, 1e-06
    %v143 = vadd.f32 %v141, 1e-06
    %v144 = vrcp.pop %v142
    %v145 = vrcp.pop %v143
    %s146 = sld [smem:[#allocation11]]
    %v147 = vstv %s146
    %v148 = vmul.f32 %v147, %v115
    %v149 = vmul.f32 %v147, %v116
    %v150 = vmul.f32 %v148, %v144
    %v151 = vmul.f32 %v149, %v145
    %s152 = sld [smem:[#allocation11 + $0x1]]
    %v153 = vstv %s152
    %v154 = vadd.f32 %v150, %v153
    %v155 = vadd.f32 %v151, %v153
    %v156 = vpack.c.bf16 %v155, %v154
    %v157 = vld [vmem:[#allocation6] sm:$0xf]
    %v158 = vld [vmem:[#allocation6 + $0x4] sm:$0xf]
    %v159 = vld [vmem:[#allocation6 + $0x8] sm:$0xf]
    %v160 = vld [vmem:[#allocation6 + $0xc] sm:$0xf]
    %v161 = vld [vmem:[%s4] sm:$0x1]
    %v163 = vlaneseq
    %v164 = vshrl.u32 %v163, 7
    %v165 = vsub.s32 0, %v164
    %v166 = vrot.slane %v161, %v165
    %v172 = vunpack.c.l.b16 %v157
    %v173 = vunpack.c.l.b16 %v158
    %v174 = vunpack.c.l.b16 %v159
    %v175 = vunpack.c.l.b16 %v160
    %v176 = vpack.c.b16 %v173, %v172
    %v177 = vpack.c.b16 %v175, %v174
    %v181 = vsel %vm105, %v156, 0
    %183 = vmatprep.subr.bf16.mxu0 0
    %184 = vmatpush1.bf16.msra.mxu0 %v176
    %185 = vmatprep.subr.bf16.mxu0 0
    %186 = vmatpush1.bf16.msra.mxu0 %v177
    %187 = vmatprep.subr.bf16.mxu0 0
    %188 = vmatpush1.bf16.msra.mxu0 0
    %189 = vmatprep.subr.bf16.mxu0 0
    %190 = vmatpush1.bf16.msra.mxu0 0
    %191 = vmatprep.subr.bf16.mxu0 0
    %192 = vmatpush1.bf16.msra.mxu0 0
    %193 = vmatprep.subr.bf16.mxu0 0
    %194 = vmatpush1.bf16.msra.mxu0 0
    %195 = vmatprep.subr.bf16.mxu0 0
    %196 = vmatpush1.bf16.msra.mxu0 0
    %197 = vmatprep.subr.bf16.mxu0 0
    %198 = vmatpush1.bf16.msra.mxu0 0
    %199 = vmatprep.subr.bf16.mxu0 0
    %200 = vmatpush1.bf16.msra.mxu0 0
    %201 = vmatprep.subr.bf16.mxu0 0
    %202 = vmatpush1.bf16.msra.mxu0 0
    %203 = vmatprep.subr.bf16.mxu0 0
    %204 = vmatpush1.bf16.msra.mxu0 0
    %205 = vmatprep.subr.bf16.mxu0 0
    %206 = vmatpush1.bf16.msra.mxu0 0
    %207 = vmatprep.subr.bf16.mxu0 0
    %208 = vmatpush1.bf16.msra.mxu0 0
    %209 = vmatprep.subr.bf16.mxu0 0
    %210 = vmatpush1.bf16.msra.mxu0 0
    %211 = vmatprep.subr.bf16.mxu0 0
    %212 = vmatpush1.bf16.msra.mxu0 0
    %213 = vmatprep.subr.bf16.mxu0 0
    %214 = vmatpush1.bf16.msra.mxu0 0
    %215 = vmatprep.mubr.bf16.mxu0 0
    %216 = vmatmul.mubr.bf16.gmra.mrb[0].mxu0 %v181
    %v217 = vpop.f32.mrb[0].mxu0
    %v218 = vadd.f32 %v166, %v217
    %v219 = vpop.f32.mrb[0].mxu0
    %v220 = vpop.f32.mrb[0].mxu0
    %v221 = vadd.f32 %v166, %v220
    %v222 = vpop.f32.mrb[0].mxu0
    %223 = vdwg.mxu0
    %v224 = vpack.c.bf16 %v221, %v218
    %v226 = vunpack.c.l.b16 %v224
    %v227 = vunpack.c.h.b16 %v224
    %v228 = vpack.c.b16 %v226, %v226
    %v229 = vpack.c.b16 %v227, %v227
    %vm232 = vcmask 257024
    %233 = vst.msk [vmem:[#allocation12] sm:$0xf] %vm232, %v228
    %234 = vst.msk [vmem:[#allocation12 + $0x4] sm:$0xf] %vm232, %v229
    %v235 = vld [vmem:[#allocation8] sm:$0xf]
    %v236 = vld [vmem:[#allocation8 + $0x4] sm:$0xf]
    %v237 = vld [vmem:[#allocation8 + $0x8] sm:$0xf]
    %v238 = vld [vmem:[#allocation8 + $0xc] sm:$0xf]
    %v239 = vld [vmem:[%s5] sm:$0x1]
    %v241 = vlaneseq
    %v242 = vshrl.u32 %v241, 7
    %v243 = vsub.s32 0, %v242
    %v244 = vrot.slane %v239, %v243
    %v250 = vunpack.c.l.b16 %v235
    %v251 = vunpack.c.l.b16 %v236
    %v252 = vunpack.c.l.b16 %v237
    %v253 = vunpack.c.l.b16 %v238
    %v254 = vpack.c.b16 %v251, %v250
    %v255 = vpack.c.b16 %v253, %v252
    %258 = vmatprep.subr.bf16.mxu0 0
    %259 = vmatpush1.bf16.msra.mxu0 %v254
    %260 = vmatprep.subr.bf16.mxu0 0
    %261 = vmatpush1.bf16.msra.mxu0 %v255
    %262 = vmatprep.subr.bf16.mxu0 0
    %263 = vmatpush1.bf16.msra.mxu0 0
    %264 = vmatprep.subr.bf16.mxu0 0
    %265 = vmatpush1.bf16.msra.mxu0 0
    %266 = vmatprep.subr.bf16.mxu0 0
    %267 = vmatpush1.bf16.msra.mxu0 0
    %268 = vmatprep.subr.bf16.mxu0 0
    %269 = vmatpush1.bf16.msra.mxu0 0
    %270 = vmatprep.subr.bf16.mxu0 0
    %271 = vmatpush1.bf16.msra.mxu0 0
    %272 = vmatprep.subr.bf16.mxu0 0
    %273 = vmatpush1.bf16.msra.mxu0 0
    %274 = vmatprep.subr.bf16.mxu0 0
    %275 = vmatpush1.bf16.msra.mxu0 0
    %276 = vmatprep.subr.bf16.mxu0 0
    %277 = vmatpush1.bf16.msra.mxu0 0
    %278 = vmatprep.subr.bf16.mxu0 0
    %279 = vmatpush1.bf16.msra.mxu0 0
    %280 = vmatprep.subr.bf16.mxu0 0
    %281 = vmatpush1.bf16.msra.mxu0 0
    %282 = vmatprep.subr.bf16.mxu0 0
    %283 = vmatpush1.bf16.msra.mxu0 0
    %284 = vmatprep.subr.bf16.mxu0 0
    %285 = vmatpush1.bf16.msra.mxu0 0
    %286 = vmatprep.subr.bf16.mxu0 0
    %287 = vmatpush1.bf16.msra.mxu0 0
    %288 = vmatprep.subr.bf16.mxu0 0
    %289 = vmatpush1.bf16.msra.mxu0 0
    %290 = vmatprep.mubr.bf16.mxu0 0
    %291 = vmatmul.mubr.bf16.gmra.mrb[0].mxu0 %v181
    %v292 = vpop.f32.mrb[0].mxu0
    %v293 = vadd.f32 %v244, %v292
    %v294 = vpop.f32.mrb[0].mxu0
    %v295 = vpop.f32.mrb[0].mxu0
    %v296 = vadd.f32 %v244, %v295
    %v297 = vpop.f32.mrb[0].mxu0
    %298 = vdwg.mxu0
    %v299 = vpack.c.bf16 %v296, %v293
    %v301 = vunpack.c.l.b16 %v299
    %v302 = vunpack.c.h.b16 %v299
    %v303 = vpack.c.b16 %v301, %v301
    %v304 = vpack.c.b16 %v302, %v302
    %307 = vst.msk [vmem:[#allocation13] sm:$0xf] %vm232, %v303
    %308 = vst.msk [vmem:[#allocation13 + $0x4] sm:$0xf] %vm232, %v304
    %v309 = vld [vmem:[#allocation9] sm:$0xf]
    %v310 = vld [vmem:[#allocation9 + $0x4] sm:$0xf]
    %v311 = vld [vmem:[#allocation9 + $0x8] sm:$0xf]
    %v312 = vld [vmem:[#allocation9 + $0xc] sm:$0xf]
    %v313 = vld [vmem:[%s6] sm:$0x1]
    %v315 = vlaneseq
    %v316 = vshrl.u32 %v315, 7
    %v317 = vsub.s32 0, %v316
    %v318 = vrot.slane %v313, %v317
    %v324 = vunpack.c.l.b16 %v309
    %v325 = vunpack.c.l.b16 %v310
    %v326 = vunpack.c.l.b16 %v311
    %v327 = vunpack.c.l.b16 %v312
    %v328 = vpack.c.b16 %v325, %v324
    %v329 = vpack.c.b16 %v327, %v326
    %332 = vmatprep.subr.bf16.mxu0 0
    %333 = vmatpush1.bf16.msra.mxu0 %v328
    %334 = vmatprep.subr.bf16.mxu0 0
    %335 = vmatpush1.bf16.msra.mxu0 %v329
    %336 = vmatprep.subr.bf16.mxu0 0
    %337 = vmatpush1.bf16.msra.mxu0 0
    %338 = vmatprep.subr.bf16.mxu0 0
    %339 = vmatpush1.bf16.msra.mxu0 0
    %340 = vmatprep.subr.bf16.mxu0 0
    %341 = vmatpush1.bf16.msra.mxu0 0
    %342 = vmatprep.subr.bf16.mxu0 0
    %343 = vmatpush1.bf16.msra.mxu0 0
    %344 = vmatprep.subr.bf16.mxu0 0
    %345 = vmatpush1.bf16.msra.mxu0 0
    %346 = vmatprep.subr.bf16.mxu0 0
    %347 = vmatpush1.bf16.msra.mxu0 0
    %348 = vmatprep.subr.bf16.mxu0 0
    %349 = vmatpush1.bf16.msra.mxu0 0
    %350 = vmatprep.subr.bf16.mxu0 0
    %351 = vmatpush1.bf16.msra.mxu0 0
    %352 = vmatprep.subr.bf16.mxu0 0
    %353 = vmatpush1.bf16.msra.mxu0 0
    %354 = vmatprep.subr.bf16.mxu0 0
    %355 = vmatpush1.bf16.msra.mxu0 0
    %356 = vmatprep.subr.bf16.mxu0 0
    %357 = vmatpush1.bf16.msra.mxu0 0
    %358 = vmatprep.subr.bf16.mxu0 0
    %359 = vmatpush1.bf16.msra.mxu0 0
    %360 = vmatprep.subr.bf16.mxu0 0
    %361 = vmatpush1.bf16.msra.mxu0 0
    %362 = vmatprep.subr.bf16.mxu0 0
    %363 = vmatpush1.bf16.msra.mxu0 0
    %364 = vmatprep.mubr.bf16.mxu0 0
    %365 = vmatmul.mubr.bf16.gmra.mrb[0].mxu0 %v181
    %v366 = vpop.f32.mrb[0].mxu0
    %v367 = vadd.f32 %v318, %v366
    %v368 = vpop.f32.mrb[0].mxu0
    %v369 = vpop.f32.mrb[0].mxu0
    %v370 = vadd.f32 %v318, %v369
    %v371 = vpop.f32.mrb[0].mxu0
    %372 = vdwg.mxu0
    %v373 = vpack.c.bf16 %v370, %v367
    %v375 = vunpack.c.l.b16 %v373
    %v376 = vunpack.c.h.b16 %v373
    %v377 = vpack.c.b16 %v375, %v375
    %v378 = vpack.c.b16 %v376, %v376
    %381 = vst.msk [vmem:[#allocation15] sm:$0xf] %vm232, %v377
    %382 = vst.msk [vmem:[#allocation15 + $0x4] sm:$0xf] %vm232, %v378
    // Predicated region
    $region54: #{tpu_custom_call.1} parent=1 // pred_check
      _
    $region55: #{tpu_custom_call.1} parent=1 // pred_check_branch
      %384 = sbr.rel (0) target = $region57
    $region56: #{tpu_custom_call.1} parent=1 // pred_region
      %s386 = ssub.s32 128, 128
      %387 = vsyncadd [#allocation4], %s386
      %s388 = sshll.u32 [#allocation12], 4
      %s389 = int_to_ptr.vmem [resolvable:$true] %s388
      %394 = dma.vmem_to_hbm [thread:$0]  %s389, 128, %s8, [#allocation4], 64, 64, 4
    $region57: #{tpu_custom_call.1} parent=1 // pred_fallthru
      _
    // Predicated region
    $region58: #{tpu_custom_call.1} parent=1 // pred_check
      _
    $region59: #{tpu_custom_call.1} parent=1 // pred_check_branch
      %396 = sbr.rel (0) target = $region61
    $region60: #{tpu_custom_call.1} parent=1 // pred_region
      %s398 = ssub.s32 128, 128
      %399 = vsyncadd [#allocation14], %s398
      %s400 = sshll.u32 [#allocation13], 4
      %s401 = int_to_ptr.vmem [resolvable:$true] %s400
      %406 = dma.vmem_to_hbm [thread:$0]  %s401, 128, %s9, [#allocation14], 64, 64, 4
    $region61: #{tpu_custom_call.1} parent=1 // pred_fallthru
      _
    // Predicated region
    $region62: #{tpu_custom_call.1} parent=1 // pred_check
      _
    $region63: #{tpu_custom_call.1} parent=1 // pred_check_branch
      %408 = sbr.rel (0) target = $region65
    $region64: #{tpu_custom_call.1} parent=1 // pred_region
      %s410 = ssub.s32 128, 128
      %411 = vsyncadd [#allocation14], %s410
      %s412 = sshll.u32 [#allocation15], 4
      %s413 = int_to_ptr.vmem [resolvable:$true] %s412
      %418 = dma.vmem_to_hbm [thread:$0]  %s413, 128, %s10, [#allocation14], 64, 64, 4
    $region65: #{tpu_custom_call.1} parent=1 // pred_fallthru
      _
    // Predicated region
    $region66: #{tpu_custom_call.1} parent=1 // pred_check
      _
    $region67: #{tpu_custom_call.1} parent=1 // pred_check_branch
      %420 = sbr.rel (0) target = $region69
    $region68: #{tpu_custom_call.1} parent=1 // pred_region
      %421 = dma.done [#allocation4], 128
    $region69: #{tpu_custom_call.1} parent=1 // pred_fallthru
      _
    // Predicated region
    $region70: #{tpu_custom_call.1} parent=1 // pred_check
      _
    $region71: #{tpu_custom_call.1} parent=1 // pred_check_branch
      %423 = sbr.rel (0) target = $region73
    $region72: #{tpu_custom_call.1} parent=1 // pred_region
      %424 = dma.done [#allocation14], 128
    $region73: #{tpu_custom_call.1} parent=1 // pred_fallthru
      _
    // Predicated region
    $region74: #{tpu_custom_call.1} parent=1 // pred_check
      _
    $region75: #{tpu_custom_call.1} parent=1 // pred_check_branch
      %426 = sbr.rel (0) target = $region77
    $region76: #{tpu_custom_call.1} parent=1 // pred_region
      %427 = dma.done [#allocation14], 128
    $region77: #{tpu_custom_call.1} parent=1 // pred_fallthru
      _
    %428 = vsyncpa [#allocation3], 1
    %429 = vsyncpa [#allocation7], 1
    %430 = vsyncpa [#allocation10], 1
    %431 = vsyncpa [#allocation4], 1
    %432 = vsyncpa [#allocation14], 1
    %433 = vsyncpa [#allocation5], 1

</llo_original>
